<compile_context>
chip_gen: v7x
topology: tpu7x:2x2x1
jax: 0.10.0
libtpu: 0.0.40
codegen_flags: <defaults>
</compile_context>

<pallas_src>
import jax
import jax.numpy as jnp
from jax.experimental import pallas as pl
from jax.experimental.pallas import tpu as pltpu


def embed_kernel(x_ref, w1_ref, b1_ref, w2_ref, b2_ref, o_ref):
    # x arrives f32 from HBM; cast to the weight (matmul) dtype in-kernel so the
    # x stream is only read once from HBM (no separate HLO cast pass).
    x = x_ref[...].astype(w1_ref.dtype)

    # Linear 1 (MXU, bf16 operands, f32 accumulation) + bias + ReLU (f32 VPU).
    h = jnp.dot(x, w1_ref[...], preferred_element_type=jnp.float32)
    h = jnp.maximum(h + b1_ref[...], 0.0)          # b1 is (1, dim_out), broadcasts

    # Linear 2: cast activations to the weight dtype for the MXU, accumulate f32.
    y = jnp.dot(h.astype(w2_ref.dtype), w2_ref[...],
                preferred_element_type=jnp.float32)
    y = y + b2_ref[...]

    # L2 normalization along features, matching Normalize(power=2):
    #   norm = sqrt(sum(y^2, axis=1, keepdims=True)); out = y / norm
    # rsqrt goes to the EUP slot; max(ss, eps) keeps any unused/ragged rows
    # finite (they are masked at writeback anyway).
    ss = jnp.maximum(jnp.sum(y * y, axis=1, keepdims=True), 1e-12)
    o_ref[...] = (y * jax.lax.rsqrt(ss)).astype(o_ref.dtype)


def _round_up(n, m):
    return ((n + m - 1) // m) * m


def _detect_tensorcores():
    # v7x has 2 TensorCores per chip; v5e/v6e have 1.  Best-effort detection;
    # falling back to 1 is always safe (just no batch split).
    try:
        kind = (getattr(jax.devices()[0], "device_kind", "") or "").lower()
        if "v7" in kind:
            return 2
    except Exception:
        pass
    return 1


def embed_forward(x, w1, b1, w2, b2, *, tile_m=2048, out_dtype=jnp.bfloat16,
                  num_tensorcores=None):
    """Fused Linear -> ReLU -> Linear -> L2-normalize.

    w1/w2 should already be in the desired matmul dtype (bf16); biases are f32
    and added to the f32 accumulator.  x may be f32 (cast happens in-kernel).
    """
    B, dim_in = x.shape
    dim_out = w1.shape[1]
    if num_tensorcores is None:
        num_tensorcores = _detect_tensorcores()

    # Batch tile: a block equal to the full batch is always legal; otherwise
    # blocks must be a multiple of 8 rows.  On v7x split the batch across >= 2
    # grid steps (megacore); on single-core chips keep the biggest tile.
    tm = None
    if num_tensorcores > 1:
        cand = _round_up(pl.cdiv(B, num_tensorcores), 8)
        if 0 < cand < B and cand <= tile_m:
            tm = cand
    if tm is None:
        tm = B if B <= tile_m else tile_m
    grid = (pl.cdiv(B, tm),)
    # No jnp.pad: a ragged final block (B % tm != 0) is masked by Pallas at
    # writeback, and the eps guard keeps garbage rows finite in the meantime.

    flops = 2 * B * (dim_in * dim_out + dim_out * dim_out)
    bytes_accessed = (
        x.size * x.dtype.itemsize
        + w1.size * w1.dtype.itemsize + w2.size * w2.dtype.itemsize
        + b1.size * b1.dtype.itemsize + b2.size * b2.dtype.itemsize
        + B * dim_out * jnp.dtype(out_dtype).itemsize)
    cost = pl.CostEstimate(flops=flops, transcendentals=B,
                           bytes_accessed=bytes_accessed)

    out = pl.pallas_call(
        embed_kernel,
        out_shape=jax.ShapeDtypeStruct((B, dim_out), out_dtype),
        grid_spec=pltpu.PrefetchScalarGridSpec(
            num_scalar_prefetch=0,
            grid=grid,
            in_specs=[
                pl.BlockSpec((tm, dim_in), lambda i: (i, 0)),        # x tile (streamed)
                pl.BlockSpec((dim_in, dim_out), lambda i: (0, 0)),   # W1 (invariant)
                pl.BlockSpec((1, dim_out), lambda i: (0, 0)),        # b1 (invariant)
                pl.BlockSpec((dim_out, dim_out), lambda i: (0, 0)),  # W2 (invariant)
                pl.BlockSpec((1, dim_out), lambda i: (0, 0)),        # b2 (invariant)
            ],
            out_specs=pl.BlockSpec((tm, dim_out), lambda i: (i, 0)),
        ),
        compiler_params=pltpu.CompilerParams(
            dimension_semantics=("parallel",),   # batch axis -> megacore sharding
        ),
        cost_estimate=cost,
    )(x, w1, b1, w2, b2)

    return out


if __name__ == "__main__":
    # Module shapes: dim_in=64, dim_out=128 (Embed defaults), batch=16.
    B, dim_in, dim_out = 16, 64, 128

    key = jax.random.PRNGKey(0)
    kx, k1, k2, k3, k4 = jax.random.split(key, 5)

    x = jax.random.normal(kx, (B, dim_in), dtype=jnp.float32)

    # Deterministic parameter init (Kaiming-uniform-ish scaling like nn.Linear),
    # stored already transposed to (in, out) for the kernel's x @ W convention.
    bound1 = 1.0 / (dim_in ** 0.5)
    bound2 = 1.0 / (dim_out ** 0.5)
    w1 = jax.random.uniform(k1, (dim_in, dim_out), jnp.float32, -bound1, bound1)
    b1 = jax.random.uniform(k2, (1, dim_out), jnp.float32, -bound1, bound1)
    w2 = jax.random.uniform(k3, (dim_out, dim_out), jnp.float32, -bound2, bound2)
    b2 = jax.random.uniform(k4, (1, dim_out), jnp.float32, -bound2, bound2)

    # Pre-cast weights ONCE at init (hoisted out of the per-call path).
    w1_bf16 = w1.astype(jnp.bfloat16)
    w2_bf16 = w2.astype(jnp.bfloat16)

    out = embed_forward(x, w1_bf16, b1, w2_bf16, b2)
    out = jax.block_until_ready(out)

    # Pure-JAX f32 reference (same math as the PyTorch module).  Looser
    # tolerance because the kernel's matmul operands and output are bf16.
    h_ref = jnp.maximum(x @ w1 + b1, 0.0)
    y_ref = h_ref @ w2 + b2
    ref = y_ref / jnp.sqrt(jnp.sum(y_ref * y_ref, axis=1, keepdims=True))

    out_f32 = out.astype(jnp.float32)
    assert out.shape == (B, dim_out)
    assert bool(jnp.all(jnp.isfinite(out_f32)))
    assert jnp.allclose(out_f32, ref, atol=2e-2, rtol=2e-2)

    print("KERNEL_OK")
</pallas_src>

<mosaic_0001>
module attributes {stable_mosaic.version = 11 : i64} {
  func.func @embed_kernel(%arg0: i32, %arg1: memref<16x64xf32, #tpu.memory_space<vmem>>, %arg2: memref<64x128xbf16, #tpu.memory_space<vmem>>, %arg3: memref<1x128xf32, #tpu.memory_space<vmem>>, %arg4: memref<128x128xbf16, #tpu.memory_space<vmem>>, %arg5: memref<1x128xf32, #tpu.memory_space<vmem>>, %arg6: memref<16x128xbf16, #tpu.memory_space<vmem>>) attributes {dimension_semantics = [#tpu.dimension_semantics<parallel>], iteration_bounds = array<i64: 1>, scalar_prefetch = 0 : i64, scratch_operands = 0 : i64, tpu.core_type = #tpu.core_type<tc>, window_params = [{transform_indices = @transform_0, window_bounds = array<i64: 16, 64>}, {pipeline_mode = #tpu.pipeline_mode<synchronous>, transform_indices = @transform_1, window_bounds = array<i64: 64, 128>}, {pipeline_mode = #tpu.pipeline_mode<synchronous>, transform_indices = @transform_2, window_bounds = array<i64: 1, 128>}, {pipeline_mode = #tpu.pipeline_mode<synchronous>, transform_indices = @transform_3, window_bounds = array<i64: 128, 128>}, {pipeline_mode = #tpu.pipeline_mode<synchronous>, transform_indices = @transform_4, window_bounds = array<i64: 1, 128>}, {transform_indices = @transform_5, window_bounds = array<i64: 16, 128>}]} {
    %c0 = arith.constant 0 : index
    %c0_0 = arith.constant 0 : index
    %0 = vector.load %arg1[%c0, %c0_0] : memref<16x64xf32, #tpu.memory_space<vmem>>, vector<16x64xf32>
    %1 = arith.truncf %0 : vector<16x64xf32> to vector<16x64xbf16>
    %c0_1 = arith.constant 0 : index
    %c0_2 = arith.constant 0 : index
    %2 = vector.load %arg2[%c0_1, %c0_2] : memref<64x128xbf16, #tpu.memory_space<vmem>>, vector<64x128xbf16>
    %cst = arith.constant dense<0.000000e+00> : vector<16x128xf32>
    %3 = tpu.matmul %1, %2, %cst {dimension_numbers = #tpu.dot_dimension_numbers<[1], [0], [0], [1], [0, 0, 1, 1], [], []>} : vector<16x64xbf16>, vector<64x128xbf16>, vector<16x128xf32> -> vector<16x128xf32>
    %c0_3 = arith.constant 0 : index
    %c0_4 = arith.constant 0 : index
    %4 = vector.load %arg3[%c0_3, %c0_4] : memref<1x128xf32, #tpu.memory_space<vmem>>, vector<1x128xf32>
    %5 = vector.broadcast %4 : vector<1x128xf32> to vector<16x128xf32>
    %6 = arith.addf %3, %5 : vector<16x128xf32>
    %cst_5 = arith.constant 0.000000e+00 : f32
    %7 = vector.broadcast %cst_5 : f32 to vector<16x128xf32>
    %8 = arith.maximumf %6, %7 : vector<16x128xf32>
    %9 = arith.truncf %8 : vector<16x128xf32> to vector<16x128xbf16>
    %c0_6 = arith.constant 0 : index
    %c0_7 = arith.constant 0 : index
    %10 = vector.load %arg4[%c0_6, %c0_7] : memref<128x128xbf16, #tpu.memory_space<vmem>>, vector<128x128xbf16>
    %cst_8 = arith.constant dense<0.000000e+00> : vector<16x128xf32>
    %11 = tpu.matmul %9, %10, %cst_8 {dimension_numbers = #tpu.dot_dimension_numbers<[1], [0], [0], [1], [0, 0, 1, 1], [], []>} : vector<16x128xbf16>, vector<128x128xbf16>, vector<16x128xf32> -> vector<16x128xf32>
    %c0_9 = arith.constant 0 : index
    %c0_10 = arith.constant 0 : index
    %12 = vector.load %arg5[%c0_9, %c0_10] : memref<1x128xf32, #tpu.memory_space<vmem>>, vector<1x128xf32>
    %13 = vector.broadcast %12 : vector<1x128xf32> to vector<16x128xf32>
    %14 = arith.addf %11, %13 : vector<16x128xf32>
    %15 = arith.mulf %14, %14 : vector<16x128xf32>
    %cst_11 = arith.constant dense<0.000000e+00> : vector<16xf32>
    %16 = vector.multi_reduction <add>, %15, %cst_11 [1] : vector<16x128xf32> to vector<16xf32>
    %17 = vector.shape_cast %16 : vector<16xf32> to vector<16x1xf32>
    %cst_12 = arith.constant 9.99999996E-13 : f32
    %18 = vector.broadcast %cst_12 : f32 to vector<16x1xf32>
    %19 = arith.maximumf %17, %18 : vector<16x1xf32>
    %20 = math.rsqrt %19 : vector<16x1xf32>
    %21 = vector.broadcast %20 : vector<16x1xf32> to vector<16x128xf32>
    %22 = arith.mulf %14, %21 : vector<16x128xf32>
    %23 = arith.truncf %22 : vector<16x128xf32> to vector<16x128xbf16>
    %c0_13 = arith.constant 0 : index
    %c0_14 = arith.constant 0 : index
    %24 = vector.load %arg6[%c0_13, %c0_14] : memref<16x128xbf16, #tpu.memory_space<vmem>>, vector<16x128xbf16>
    tpu.vector_store %arg6[%c0_13, %c0_14], %23 {strides = array<i32>} : memref<16x128xbf16, #tpu.memory_space<vmem>>, vector<16x128xbf16>,
    return
  }
  func.func @transform_0(%arg0: i32) -> (i32, i32) {
    %c0_i32 = arith.constant 0 : i32
    %c0_i32_0 = arith.constant 0 : i32
    return %arg0, %c0_i32 : i32, i32
  }
  func.func @transform_1(%arg0: i32) -> (i32, i32) {
    %c0_i32 = arith.constant 0 : i32
    %c0_i32_0 = arith.constant 0 : i32
    %c0_i32_1 = arith.constant 0 : i32
    return %c0_i32, %c0_i32_0 : i32, i32
  }
  func.func @transform_2(%arg0: i32) -> (i32, i32) {
    %c0_i32 = arith.constant 0 : i32
    %c0_i32_0 = arith.constant 0 : i32
    %c0_i32_1 = arith.constant 0 : i32
    return %c0_i32, %c0_i32_0 : i32, i32
  }
  func.func @transform_3(%arg0: i32) -> (i32, i32) {
    %c0_i32 = arith.constant 0 : i32
    %c0_i32_0 = arith.constant 0 : i32
    %c0_i32_1 = arith.constant 0 : i32
    return %c0_i32, %c0_i32_0 : i32, i32
  }
  func.func @transform_4(%arg0: i32) -> (i32, i32) {
    %c0_i32 = arith.constant 0 : i32
    %c0_i32_0 = arith.constant 0 : i32
    %c0_i32_1 = arith.constant 0 : i32
    return %c0_i32, %c0_i32_0 : i32, i32
  }
  func.func @transform_5(%arg0: i32) -> (i32, i32) {
    %c0_i32 = arith.constant 0 : i32
    %c0_i32_0 = arith.constant 0 : i32
    return %arg0, %c0_i32 : i32, i32
  }
}

</mosaic_0001>

<llo_original>
// kernel: tpu_custom_call.1
$region0: #{tpu_custom_call.1}
  #allocation0 [shape = 'u32[]', space=smem, size = 0x4, offset = 0x4, fixed_abs, tag = 'smem constant byte address 0x4 - core index']
  #allocation1 [shape = 'u32[144,128]{1,0:T(1,128)}', space=vmem, size = 0x12000, scoped, tag = 'internal scratch']
  %s0 = inlined_call_operand.hbm [shape: f32[16,64], index: 0, kind: input, shape index: {}]
  %s1 = inlined_call_operand.hbm [shape: bf16[64,128], index: 1, kind: input, shape index: {}]
  %s2 = inlined_call_operand.vmem [shape: f32[1,128], index: 2, kind: input, shape index: {}]
  %s3 = inlined_call_operand.hbm [shape: bf16[128,128], index: 3, kind: input, shape index: {}]
  %s4 = inlined_call_operand.vmem [shape: f32[1,128], index: 4, kind: input, shape index: {}]
  %s5 = inlined_call_operand.hbm [shape: bf16[16,128], index: 5, kind: output, shape index: {}]
  %s6 = sld [smem:[#allocation0]]
  $region42: #{tpu_custom_call.1} parent=0
    _
  %s8 = ssub.s32 1, %s6
  %s9 = scalar_select 0, %s8, %s6
  $region1: #{tpu_custom_call.1} parent=0
    #allocation2 [shape = 'u8[8192]{0}', space=vmem, size = 0x2000, scoped, tag = 'input window, operand 0, single buffered']
    #allocation3 [shape = 's32[1]{0}', space=sflag, size = 0x4, scoped, tag = 'scoped memory for tpu_custom_call.1']
    #allocation4 [shape = 's32[1]{0}', space=sflag, size = 0x4, scoped, tag = 'scoped memory for tpu_custom_call.1']
    #allocation5 [shape = 'u8[16384]{0}', space=vmem, size = 0x4000, scoped, tag = 'input window, operand 1, single buffered']
    #allocation6 [shape = 's32[1]{0}', space=sflag, size = 0x4, scoped, tag = 'scoped memory for tpu_custom_call.1']
    #allocation7 [shape = 'u8[32768]{0}', space=vmem, size = 0x8000, scoped, tag = 'input window, operand 3, single buffered']
    #allocation8 [shape = 'u8[4096]{0}', space=vmem, size = 0x1000, scoped, tag = 'output window, operand 0, single buffered']
    %10 = vsyncpa [#allocation3], 0
    %11 = vsyncpa [#allocation6], 0
    %12 = vsyncpa [#allocation4], 0
    // Predicated region
    $region2: #{tpu_custom_call.1} parent=1 // pred_check
      _
    $region3: #{tpu_custom_call.1} parent=1 // pred_check_branch
      %14 = sbr.rel (0) target = $region5
    $region4: #{tpu_custom_call.1} parent=1 // pred_region
      %s16 = ssub.s32 256, 256
      %17 = vsyncadd [#allocation3], %s16
      %s18 = sshll.u32 [#allocation2], 4
      %s19 = int_to_ptr.vmem [resolvable:$true] %s18
      %24 = dma.hbm_to_vmem [thread:$0]  %s0, 256, %s19, [#allocation3], 128, 128, 8
    $region5: #{tpu_custom_call.1} parent=1 // pred_fallthru
      _
    // Predicated region
    $region6: #{tpu_custom_call.1} parent=1 // pred_check
      _
    $region7: #{tpu_custom_call.1} parent=1 // pred_check_branch
      %26 = sbr.rel (0) target = $region9
    $region8: #{tpu_custom_call.1} parent=1 // pred_region
      %s28 = ssub.s32 512, 512
      %29 = vsyncadd [#allocation6], %s28
      %s30 = sshll.u32 [#allocation5], 4
      %s31 = int_to_ptr.vmem [resolvable:$true] %s30
      %36 = dma.hbm_to_vmem [thread:$0]  %s1, 512, %s31, [#allocation6], 64, 64, 4
    $region9: #{tpu_custom_call.1} parent=1 // pred_fallthru
      _
    // Predicated region
    $region10: #{tpu_custom_call.1} parent=1 // pred_check
      _
    $region11: #{tpu_custom_call.1} parent=1 // pred_check_branch
      %38 = sbr.rel (0) target = $region13
    $region12: #{tpu_custom_call.1} parent=1 // pred_region
      _
    $region13: #{tpu_custom_call.1} parent=1 // pred_fallthru
      _
    // Predicated region
    $region14: #{tpu_custom_call.1} parent=1 // pred_check
      _
    $region15: #{tpu_custom_call.1} parent=1 // pred_check_branch
      %40 = sbr.rel (0) target = $region17
    $region16: #{tpu_custom_call.1} parent=1 // pred_region
      %s42 = ssub.s32 1024, 1024
      %43 = vsyncadd [#allocation6], %s42
      %s44 = sshll.u32 [#allocation7], 4
      %s45 = int_to_ptr.vmem [resolvable:$true] %s44
      %50 = dma.hbm_to_vmem [thread:$0]  %s3, 1024, %s45, [#allocation6], 64, 64, 4
    $region17: #{tpu_custom_call.1} parent=1 // pred_fallthru
      _
    // Predicated region
    $region18: #{tpu_custom_call.1} parent=1 // pred_check
      _
    $region19: #{tpu_custom_call.1} parent=1 // pred_check_branch
      %52 = sbr.rel (0) target = $region21
    $region20: #{tpu_custom_call.1} parent=1 // pred_region
      _
    $region21: #{tpu_custom_call.1} parent=1 // pred_fallthru
      _
    // Predicated region
    $region22: #{tpu_custom_call.1} parent=1 // pred_check
      _
    $region23: #{tpu_custom_call.1} parent=1 // pred_check_branch
      %54 = sbr.rel (0) target = $region25
    $region24: #{tpu_custom_call.1} parent=1 // pred_region
      %55 = dma.done [#allocation3], 256
    $region25: #{tpu_custom_call.1} parent=1 // pred_fallthru
      _
    // Predicated region
    $region26: #{tpu_custom_call.1} parent=1 // pred_check
      _
    $region27: #{tpu_custom_call.1} parent=1 // pred_check_branch
      %57 = sbr.rel (0) target = $region29
    $region28: #{tpu_custom_call.1} parent=1 // pred_region
      %58 = dma.done [#allocation6], 512
    $region29: #{tpu_custom_call.1} parent=1 // pred_fallthru
      _
    // Predicated region
    $region30: #{tpu_custom_call.1} parent=1 // pred_check
      _
    $region31: #{tpu_custom_call.1} parent=1 // pred_check_branch
      %60 = sbr.rel (0) target = $region33
    $region32: #{tpu_custom_call.1} parent=1 // pred_region
      %61 = dma.done [#allocation6], 1024
    $region33: #{tpu_custom_call.1} parent=1 // pred_fallthru
      _
    %v63 = vld [vmem:[#allocation2] sm:$0xff]
    %v64 = vld [vmem:[#allocation2 + $0x8] sm:$0xff]
    %v65 = vpack.c.bf16 %v64, %v63
    %v66 = vld [vmem:[#allocation5] sm:$0xf]
    %v67 = vld [vmem:[#allocation5 + $0x4] sm:$0xf]
    %v68 = vld [vmem:[#allocation5 + $0x8] sm:$0xf]
    %v69 = vld [vmem:[#allocation5 + $0xc] sm:$0xf]
    %v70 = vld [vmem:[#allocation5 + $0x10] sm:$0xf]
    %v71 = vld [vmem:[#allocation5 + $0x14] sm:$0xf]
    %v72 = vld [vmem:[#allocation5 + $0x18] sm:$0xf]
    %v73 = vld [vmem:[#allocation5 + $0x1c] sm:$0xf]
    %v74 = vld [vmem:[%s2] sm:$0x1]
    %v76 = vlaneseq
    %v77 = vshrl.u32 %v76, 7
    %v78 = vsub.s32 0, %v77
    %v79 = vrot.slane %v74, %v78
    %v89 = vunpack.c.l.b16 %v66
    %v90 = vunpack.c.l.b16 %v67
    %v91 = vunpack.c.l.b16 %v68
    %v92 = vunpack.c.l.b16 %v69
    %v93 = vunpack.c.l.b16 %v70
    %v94 = vunpack.c.l.b16 %v71
    %v95 = vunpack.c.l.b16 %v72
    %v96 = vunpack.c.l.b16 %v73
    %v97 = vpack.c.b16 %v90, %v89
    %v98 = vpack.c.b16 %v92, %v91
    %v99 = vpack.c.b16 %v94, %v93
    %v100 = vpack.c.b16 %v96, %v95
    %vm105 = vcmask 523264
    %v107 = vsel %vm105, %v65, 0
    %109 = vmatprep.subr.bf16.mxu0 0
    %110 = vmatpush1.bf16.msra.mxu0 %v97
    %111 = vmatprep.subr.bf16.mxu0 0
    %112 = vmatpush1.bf16.msra.mxu0 %v98
    %113 = vmatprep.subr.bf16.mxu0 0
    %114 = vmatpush1.bf16.msra.mxu0 %v99
    %115 = vmatprep.subr.bf16.mxu0 0
    %116 = vmatpush1.bf16.msra.mxu0 %v100
    %117 = vmatprep.subr.bf16.mxu0 0
    %118 = vmatpush1.bf16.msra.mxu0 0
    %119 = vmatprep.subr.bf16.mxu0 0
    %120 = vmatpush1.bf16.msra.mxu0 0
    %121 = vmatprep.subr.bf16.mxu0 0
    %122 = vmatpush1.bf16.msra.mxu0 0
    %123 = vmatprep.subr.bf16.mxu0 0
    %124 = vmatpush1.bf16.msra.mxu0 0
    %125 = vmatprep.subr.bf16.mxu0 0
    %126 = vmatpush1.bf16.msra.mxu0 0
    %127 = vmatprep.subr.bf16.mxu0 0
    %128 = vmatpush1.bf16.msra.mxu0 0
    %129 = vmatprep.subr.bf16.mxu0 0
    %130 = vmatpush1.bf16.msra.mxu0 0
    %131 = vmatprep.subr.bf16.mxu0 0
    %132 = vmatpush1.bf16.msra.mxu0 0
    %133 = vmatprep.subr.bf16.mxu0 0
    %134 = vmatpush1.bf16.msra.mxu0 0
    %135 = vmatprep.subr.bf16.mxu0 0
    %136 = vmatpush1.bf16.msra.mxu0 0
    %137 = vmatprep.subr.bf16.mxu0 0
    %138 = vmatpush1.bf16.msra.mxu0 0
    %139 = vmatprep.subr.bf16.mxu0 0
    %140 = vmatpush1.bf16.msra.mxu0 0
    %141 = vmatprep.mubr.bf16.mxu0 0
    %142 = vmatmul.mubr.bf16.gmra.mrb[0].mxu0 %v107
    %v143 = vpop.f32.mrb[0].mxu0
    %v144 = vadd.f32 %v79, %v143
    %v145 = vpop.f32.mrb[0].mxu0
    %v146 = vpop.f32.mrb[0].mxu0
    %v147 = vadd.f32 %v79, %v146
    %v148 = vpop.f32.mrb[0].mxu0
    %149 = vdwg.mxu0
    %v150 = vmax.f32 %v144, 0.0
    %v151 = vmax.f32 %v147, 0.0
    %v152 = vpack.c.bf16 %v151, %v150
    %v153 = vld [vmem:[#allocation7] sm:$0xf]
    %v154 = vld [vmem:[#allocation7 + $0x4] sm:$0xf]
    %v155 = vld [vmem:[#allocation7 + $0x8] sm:$0xf]
    %v156 = vld [vmem:[#allocation7 + $0xc] sm:$0xf]
    %v157 = vld [vmem:[#allocation7 + $0x10] sm:$0xf]
    %v158 = vld [vmem:[#allocation7 + $0x14] sm:$0xf]
    %v159 = vld [vmem:[#allocation7 + $0x18] sm:$0xf]
    %v160 = vld [vmem:[#allocation7 + $0x1c] sm:$0xf]
    %v161 = vld [vmem:[#allocation7 + $0x20] sm:$0xf]
    %v162 = vld [vmem:[#allocation7 + $0x24] sm:$0xf]
    %v163 = vld [vmem:[#allocation7 + $0x28] sm:$0xf]
    %v164 = vld [vmem:[#allocation7 + $0x2c] sm:$0xf]
    %v165 = vld [vmem:[#allocation7 + $0x30] sm:$0xf]
    %v166 = vld [vmem:[#allocation7 + $0x34] sm:$0xf]
    %v167 = vld [vmem:[#allocation7 + $0x38] sm:$0xf]
    %v168 = vld [vmem:[#allocation7 + $0x3c] sm:$0xf]
    %v169 = vld [vmem:[%s4] sm:$0x1]
    %v171 = vlaneseq
    %v172 = vshrl.u32 %v171, 7
    %v173 = vsub.s32 0, %v172
    %v174 = vrot.slane %v169, %v173
    %v192 = vunpack.c.l.b16 %v153
    %v193 = vunpack.c.l.b16 %v154
    %v194 = vunpack.c.l.b16 %v155
    %v195 = vunpack.c.l.b16 %v156
    %v196 = vunpack.c.l.b16 %v157
    %v197 = vunpack.c.l.b16 %v158
    %v198 = vunpack.c.l.b16 %v159
    %v199 = vunpack.c.l.b16 %v160
    %v200 = vunpack.c.l.b16 %v161
    %v201 = vunpack.c.l.b16 %v162
    %v202 = vunpack.c.l.b16 %v163
    %v203 = vunpack.c.l.b16 %v164
    %v204 = vunpack.c.l.b16 %v165
    %v205 = vunpack.c.l.b16 %v166
    %v206 = vunpack.c.l.b16 %v167
    %v207 = vunpack.c.l.b16 %v168
    %v208 = vpack.c.b16 %v193, %v192
    %v209 = vpack.c.b16 %v195, %v194
    %v210 = vpack.c.b16 %v197, %v196
    %v211 = vpack.c.b16 %v199, %v198
    %v212 = vpack.c.b16 %v201, %v200
    %v213 = vpack.c.b16 %v203, %v202
    %v214 = vpack.c.b16 %v205, %v204
    %v215 = vpack.c.b16 %v207, %v206
    %224 = vmatprep.subr.bf16.mxu0 0
    %225 = vmatpush1.bf16.msra.mxu0 %v208
    %226 = vmatprep.subr.bf16.mxu0 0
    %227 = vmatpush1.bf16.msra.mxu0 %v209
    %228 = vmatprep.subr.bf16.mxu0 0
    %229 = vmatpush1.bf16.msra.mxu0 %v210
    %230 = vmatprep.subr.bf16.mxu0 0
    %231 = vmatpush1.bf16.msra.mxu0 %v211
    %232 = vmatprep.subr.bf16.mxu0 0
    %233 = vmatpush1.bf16.msra.mxu0 %v212
    %234 = vmatprep.subr.bf16.mxu0 0
    %235 = vmatpush1.bf16.msra.mxu0 %v213
    %236 = vmatprep.subr.bf16.mxu0 0
    %237 = vmatpush1.bf16.msra.mxu0 %v214
    %238 = vmatprep.subr.bf16.mxu0 0
    %239 = vmatpush1.bf16.msra.mxu0 %v215
    %240 = vmatprep.subr.bf16.mxu0 0
    %241 = vmatpush1.bf16.msra.mxu0 0
    %242 = vmatprep.subr.bf16.mxu0 0
    %243 = vmatpush1.bf16.msra.mxu0 0
    %244 = vmatprep.subr.bf16.mxu0 0
    %245 = vmatpush1.bf16.msra.mxu0 0
    %246 = vmatprep.subr.bf16.mxu0 0
    %247 = vmatpush1.bf16.msra.mxu0 0
    %248 = vmatprep.subr.bf16.mxu0 0
    %249 = vmatpush1.bf16.msra.mxu0 0
    %250 = vmatprep.subr.bf16.mxu0 0
    %251 = vmatpush1.bf16.msra.mxu0 0
    %252 = vmatprep.subr.bf16.mxu0 0
    %253 = vmatpush1.bf16.msra.mxu0 0
    %254 = vmatprep.subr.bf16.mxu0 0
    %255 = vmatpush1.bf16.msra.mxu0 0
    %256 = vmatprep.mubr.bf16.mxu0 0
    %257 = vmatmul.mubr.bf16.gmra.mrb[0].mxu0 %v152
    %v258 = vpop.f32.mrb[0].mxu0
    %v259 = vadd.f32 %v174, %v258
    %v260 = vpop.f32.mrb[0].mxu0
    %v261 = vpop.f32.mrb[0].mxu0
    %v262 = vadd.f32 %v174, %v261
    %v263 = vpop.f32.mrb[0].mxu0
    %264 = vdwg.mxu0
    %v265 = vmul.f32 %v259, %v259
    %v266 = vmul.f32 %v262, %v262
    %267 = vadd.xlane.f32.xlu0 %v265
    %v268 = vpop.xlane.xlu0 %267
    %269 = vadd.xlane.f32.xlu0 %v266
    %v270 = vpop.xlane.xlu0 %269
    %v271 = vmax.f32 %v268, 1e-12
    %v272 = vmax.f32 %v270, 1e-12
    %v273 = vrsqrt.pop %v271
    %v274 = vrsqrt.pop %v272
    %v275 = vmul.f32 %v259, %v273
    %v276 = vmul.f32 %v262, %v274
    %v277 = vpack.c.bf16 %v276, %v275
    %v279 = vunpack.c.l.b16 %v277
    %v280 = vunpack.c.h.b16 %v277
    %v281 = vpack.c.b16 %v279, %v279
    %v282 = vpack.c.b16 %v280, %v280
    %285 = vst [vmem:[#allocation8] sm:$0xf] %v281
    %286 = vst [vmem:[#allocation8 + $0x4] sm:$0xf] %v282
    // Predicated region
    $region34: #{tpu_custom_call.1} parent=1 // pred_check
      _
    $region35: #{tpu_custom_call.1} parent=1 // pred_check_branch
      %288 = sbr.rel (0) target = $region37
    $region36: #{tpu_custom_call.1} parent=1 // pred_region
      %s290 = ssub.s32 128, 128
      %291 = vsyncadd [#allocation4], %s290
      %s292 = sshll.u32 [#allocation8], 4
      %s293 = int_to_ptr.vmem [resolvable:$true] %s292
      %298 = dma.vmem_to_hbm [thread:$0]  %s293, 128, %s5, [#allocation4], 64, 64, 4
    $region37: #{tpu_custom_call.1} parent=1 // pred_fallthru
      _
    // Predicated region
    $region38: #{tpu_custom_call.1} parent=1 // pred_check
      _
    $region39: #{tpu_custom_call.1} parent=1 // pred_check_branch
      %300 = sbr.rel (0) target = $region41
    $region40: #{tpu_custom_call.1} parent=1 // pred_region
      %301 = dma.done [#allocation4], 128
    $region41: #{tpu_custom_call.1} parent=1 // pred_fallthru
      _
    %302 = vsyncpa [#allocation3], 1
    %303 = vsyncpa [#allocation6], 1
    %304 = vsyncpa [#allocation4], 1

</llo_original>
